<compile_context>
chip_gen: v6e
topology: v6e:2x2x1
jax: 0.10.0
libtpu: 0.0.40
codegen_flags: <defaults>
</compile_context>

<pallas_src>
import functools

import jax
import jax.numpy as jnp
from jax.experimental import pallas as pl
from jax.experimental.pallas import tpu as pltpu


def _round_up(n, m):
    return ((n + m - 1) // m) * m


def _slab_layout(in_w, p):
    """Row offsets of the packed parameter slab (shared by packer and kernel)."""
    b1_row = _round_up(in_w, 8)     # layer-1 bias row (8-aligned)
    off2 = b1_row + 8               # layer-2 weights start
    b2_row = off2 + p               # layer-2 bias row
    off3 = b2_row + 8               # fused-head weights start
    b3_row = off3 + p               # fused-head bias row
    total_rows = b3_row + 8
    return b1_row, off2, b2_row, off3, b3_row, total_rows


def _policy_kernel(in_w, p, out_w, out_dim, activation_name,
                   x_ref, w_ref, out_ref):
    """One batch tile of the Gaussian policy MLP, fully in VMEM.

    x_ref:  (tb_g, IN_W)  -- G batch rows packed per row (IN_W = G*in_dim)
    w_ref:  packed parameter slab (block-diagonal replicated weights)
    out_ref:(tb_g, OUT_W) -- per row: G groups of [mean(out_dim) | std(out_dim)]
    """
    if activation_name == "tanh":
        act = jnp.tanh
    elif activation_name == "relu":
        act = lambda v: jnp.maximum(v, 0.0)
    else:
        raise ValueError(f"Unsupported activation function: {activation_name}")

    b1_row, off2, b2_row, off3, b3_row, _ = _slab_layout(in_w, p)

    x = x_ref[...]                                           # (tb_g, IN_W)

    # Hidden layer 1 (block-diagonal packed; padded lanes stay exactly 0).
    # Default f32 MXU precision matches the reference to ~1e-6; set
    # precision=jax.lax.Precision.HIGHEST here if bit-level parity is needed.
    w1 = w_ref[0:in_w, :]                                    # (IN_W, P)
    b1 = w_ref[b1_row:b1_row + 1, :]                         # (1, P)
    h = act(jnp.dot(x, w1, preferred_element_type=jnp.float32) + b1)

    # Hidden layer 2.
    w2 = w_ref[off2:off2 + p, :]                             # (P, P)
    b2 = w_ref[b2_row:b2_row + 1, :]                         # (1, P)
    h = act(jnp.dot(h, w2, preferred_element_type=jnp.float32) + b2)

    # Fused head: for each group g, cols [g*2*out_dim, g*2*out_dim+out_dim)
    # are the mean, the next out_dim cols are log_std.  Only the first OUT_W
    # lanes are useful, so slice before the bias/exp and store densely.
    wh = w_ref[off3:off3 + p, :]                             # (P, P)
    bh = w_ref[b3_row:b3_row + 1, 0:out_w]                   # (1, OUT_W)
    head = jnp.dot(h, wh, preferred_element_type=jnp.float32)[:, 0:out_w] + bh

    # Hoisted (1, OUT_W) mask -- broadcasts in the where, no full-tile iota.
    col = jax.lax.broadcasted_iota(jnp.int32, (1, out_w), 1)
    is_std = (col % (2 * out_dim)) >= out_dim
    # NOTE: jnp.exp(head) is also evaluated on the mean lanes before the
    # select; a huge positive mean would overflow to +inf in the DISCARDED
    # branch, which the element-wise where drops harmlessly (no NaN path).
    out_ref[...] = jnp.where(is_std, jnp.exp(head), head).astype(out_ref.dtype)


def pack_params(params):
    """Pack (w1,b1,w2,b2,wm,bm,ws,bs) into one block-diagonal f32 slab.

    Weights are stored as [in_features, out_features] (transposed vs. PyTorch),
    so the kernel computes x @ W + b == nn.Linear(x).  Each weight block is
    replicated G times along the lane diagonal so that G consecutive batch rows
    share one 128-lane activation row.
    """
    w1, b1 = params["w1"], params["b1"]
    w2, b2 = params["w2"], params["b2"]
    wm, bm = params["wm"], params["bm"]
    ws, bs = params["ws"], params["bs"]

    in_dim, h1 = w1.shape
    h2 = w2.shape[1]
    out_dim = wm.shape[1]

    lg = max(h1, h2, 2 * out_dim)          # per-group lane width
    G = max(1, 128 // lg)                  # batch rows packed per lane row
    P = _round_up(G * lg, 128)             # padded activation width
    in_w = G * in_dim
    out_w = G * 2 * out_dim

    b1_row, off2, b2_row, off3, b3_row, total_rows = _slab_layout(in_w, P)

    slab = jnp.zeros((total_rows, P), jnp.float32)
    for g in range(G):
        c1 = g * lg
        # Layer 1 block (group input lanes -> group hidden lanes).
        r1 = g * in_dim
        slab = slab.at[r1:r1 + in_dim, c1:c1 + h1].set(w1.astype(jnp.float32))
        slab = slab.at[b1_row, c1:c1 + h1].set(b1.reshape(-1).astype(jnp.float32))
        # Layer 2 block.
        r2 = off2 + g * lg
        slab = slab.at[r2:r2 + h1, c1:c1 + h2].set(w2.astype(jnp.float32))
        slab = slab.at[b2_row, c1:c1 + h2].set(b2.reshape(-1).astype(jnp.float32))
        # Fused head block: [mean | log_std] for this group.
        r3 = off3 + g * lg
        c3 = g * 2 * out_dim
        slab = slab.at[r3:r3 + h2, c3:c3 + out_dim].set(wm.astype(jnp.float32))
        slab = slab.at[r3:r3 + h2, c3 + out_dim:c3 + 2 * out_dim].set(ws.astype(jnp.float32))
        slab = slab.at[b3_row, c3:c3 + out_dim].set(bm.reshape(-1).astype(jnp.float32))
        slab = slab.at[b3_row, c3 + out_dim:c3 + 2 * out_dim].set(bs.reshape(-1).astype(jnp.float32))

    dims = {"in_dim": in_dim, "out_dim": out_dim, "G": G, "P": P,
            "in_w": in_w, "out_w": out_w}
    return slab, dims


def gaussian_policy_forward(x, packed, activation_fn="tanh", block_batch=4096):
    """Runs the fused Pallas policy kernel; returns (mean, std)."""
    slab, dims = packed
    out_dim = dims["out_dim"]
    G, P, in_w, out_w = dims["G"], dims["P"], dims["in_w"], dims["out_w"]

    batch = x.shape[0]
    row_quant = 8 * G                       # batch rows per 8-sublane group tile

    # Choose the number of grid steps first, then size tiles to minimize batch
    # padding.  Force >= 2 steps when there is enough work so the "parallel"
    # batch axis can be sharded across both v7x TensorCores.
    n_tiles = pl.cdiv(batch, block_batch)
    if batch >= 2 * row_quant:
        n_tiles = max(n_tiles, 2)
    tb = _round_up(pl.cdiv(batch, n_tiles), row_quant)   # batch rows per tile
    n_tiles = pl.cdiv(batch, tb)
    padded_batch = n_tiles * tb

    x = x.astype(jnp.float32)
    if padded_batch != batch:
        x = jnp.pad(x, ((0, padded_batch - batch), (0, 0)))
    # Pack G consecutive batch rows side-by-side into one activation row.
    xg = x.reshape(padded_batch // G, in_w)
    tb_g = tb // G                                        # group rows per tile

    kernel = functools.partial(_policy_kernel, in_w, P, out_w, out_dim,
                               activation_fn)
    out = pl.pallas_call(
        kernel,
        out_shape=jax.ShapeDtypeStruct((padded_batch // G, out_w), jnp.float32),
        grid=(n_tiles,),
        in_specs=[
            pl.BlockSpec((tb_g, in_w), lambda i: (i, 0)),   # x: tiled over batch
            pl.BlockSpec(slab.shape, lambda i: (0, 0)),     # params: resident,
                                                            # constant index => one DMA
        ],
        out_specs=pl.BlockSpec((tb_g, out_w), lambda i: (i, 0)),
        compiler_params=pltpu.CompilerParams(
            dimension_semantics=("parallel",)),
    )(xg, slab)

    # Each output row holds G batch rows of [mean | std]; un-pack and slice.
    out = out.reshape(padded_batch, 2 * out_dim)
    mean = out[:batch, 0:out_dim]
    std = out[:batch, out_dim:2 * out_dim]
    return mean, std


def init_params(key, input_dim, hidden_sizes, output_dim):
    """Deterministic parameter init (PyTorch-Linear-like uniform fan-in)."""
    assert len(hidden_sizes) == 2, "kernel is specialized to two hidden layers"
    sizes = [input_dim] + list(hidden_sizes)
    keys = jax.random.split(key, 2 * (len(hidden_sizes) + 2))
    params = {}
    ki = 0

    def linear(kw, kb, fan_in, fan_out):
        bound = 1.0 / jnp.sqrt(fan_in)
        w = jax.random.uniform(kw, (fan_in, fan_out), jnp.float32, -bound, bound)
        b = jax.random.uniform(kb, (1, fan_out), jnp.float32, -bound, bound)
        return w, b

    params["w1"], params["b1"] = linear(keys[ki], keys[ki + 1], sizes[0], sizes[1]); ki += 2
    params["w2"], params["b2"] = linear(keys[ki], keys[ki + 1], sizes[1], sizes[2]); ki += 2
    params["wm"], params["bm"] = linear(keys[ki], keys[ki + 1], sizes[2], output_dim); ki += 2
    params["ws"], params["bs"] = linear(keys[ki], keys[ki + 1], sizes[2], output_dim); ki += 2
    return params


def reference_forward(x, params, activation_fn="tanh"):
    act = jnp.tanh if activation_fn == "tanh" else (lambda v: jnp.maximum(v, 0.0))
    h = act(x @ params["w1"] + params["b1"])
    h = act(h @ params["w2"] + params["b2"])
    mean = h @ params["wm"] + params["bm"]
    std = jnp.exp(h @ params["ws"] + params["bs"])
    return mean, std


if __name__ == "__main__":
    # LunarLanderContinuous-like dims: obs=8, action=2, hidden=[32, 32].
    batch = 64
    input_dim = 8
    hidden_sizes = [32, 32]
    output_dim = 2
    activation_fn = "tanh"

    key = jax.random.PRNGKey(0)
    k_x, k_p = jax.random.split(key)
    x = jax.random.normal(k_x, (batch, input_dim), dtype=jnp.float32)
    params = init_params(k_p, input_dim, hidden_sizes, output_dim)

    packed = pack_params(params)   # pack once; reuse across forward calls
    mean, std = gaussian_policy_forward(x, packed, activation_fn)
    mean, std = jax.block_until_ready((mean, std))

    # Sanity check against a pure-JAX reference on the unpacked params.
    mean_ref, std_ref = reference_forward(x, params, activation_fn)
    assert mean.shape == (batch, output_dim) and std.shape == (batch, output_dim)
    assert jnp.allclose(mean, mean_ref, atol=1e-5, rtol=1e-5)
    assert jnp.allclose(std, std_ref, atol=1e-5, rtol=1e-5)
    assert bool(jnp.all(std > 0))

    # TODO(synk): action sampling / log-prob (torch.distributions) is outside
    # this module's forward; fuse it here (pltpu.prng_*) if the consumer needs it.
    print("KERNEL_OK")
</pallas_src>

<mosaic_0001>
module attributes {stable_mosaic.version = 11 : i64} {
  func.func @_policy_kernel(%arg0: i32, %arg1: memref<8x32xf32, #tpu.memory_space<vmem>>, %arg2: memref<312x128xf32, #tpu.memory_space<vmem>>, %arg3: memref<8x16xf32, #tpu.memory_space<vmem>>) attributes {dimension_semantics = [#tpu.dimension_semantics<parallel>], iteration_bounds = array<i64: 2>, scalar_prefetch = 0 : i64, scratch_operands = 0 : i64, tpu.core_type = #tpu.core_type<tc>, window_params = [{transform_indices = @transform_0, window_bounds = array<i64: 8, 32>}, {pipeline_mode = #tpu.pipeline_mode<synchronous>, transform_indices = @transform_1, window_bounds = array<i64: 312, 128>}, {transform_indices = @transform_2, window_bounds = array<i64: 8, 16>}]} {
    %c0 = arith.constant 0 : index
    %c0_0 = arith.constant 0 : index
    %0 = vector.load %arg1[%c0, %c0_0] : memref<8x32xf32, #tpu.memory_space<vmem>>, vector<8x32xf32>
    %c0_1 = arith.constant 0 : index
    %c0_2 = arith.constant 0 : index
    %1 = vector.load %arg2[%c0_1, %c0_2] : memref<312x128xf32, #tpu.memory_space<vmem>>, vector<32x128xf32>
    %c32 = arith.constant 32 : index
    %c0_3 = arith.constant 0 : index
    %2 = vector.load %arg2[%c32, %c0_3] : memref<312x128xf32, #tpu.memory_space<vmem>>, vector<1x128xf32>
    %cst = arith.constant dense<0.000000e+00> : vector<8x128xf32>
    %3 = tpu.matmul %0, %1, %cst {dimension_numbers = #tpu.dot_dimension_numbers<[1], [0], [0], [1], [0, 0, 1, 1], [], []>} : vector<8x32xf32>, vector<32x128xf32>, vector<8x128xf32> -> vector<8x128xf32>
    %4 = vector.broadcast %2 : vector<1x128xf32> to vector<8x128xf32>
    %5 = arith.addf %3, %4 : vector<8x128xf32>
    %6 = math.tanh %5 : vector<8x128xf32>
    %c40 = arith.constant 40 : index
    %c0_4 = arith.constant 0 : index
    %7 = vector.load %arg2[%c40, %c0_4] : memref<312x128xf32, #tpu.memory_space<vmem>>, vector<128x128xf32>
    %c168 = arith.constant 168 : index
    %c0_5 = arith.constant 0 : index
    %8 = vector.load %arg2[%c168, %c0_5] : memref<312x128xf32, #tpu.memory_space<vmem>>, vector<1x128xf32>
    %cst_6 = arith.constant dense<0.000000e+00> : vector<8x128xf32>
    %9 = tpu.matmul %6, %7, %cst_6 {dimension_numbers = #tpu.dot_dimension_numbers<[1], [0], [0], [1], [0, 0, 1, 1], [], []>} : vector<8x128xf32>, vector<128x128xf32>, vector<8x128xf32> -> vector<8x128xf32>
    %10 = vector.broadcast %8 : vector<1x128xf32> to vector<8x128xf32>
    %11 = arith.addf %9, %10 : vector<8x128xf32>
    %12 = math.tanh %11 : vector<8x128xf32>
    %c176 = arith.constant 176 : index
    %c0_7 = arith.constant 0 : index
    %13 = vector.load %arg2[%c176, %c0_7] : memref<312x128xf32, #tpu.memory_space<vmem>>, vector<128x128xf32>
    %c304 = arith.constant 304 : index
    %c0_8 = arith.constant 0 : index
    %14 = vector.load %arg2[%c304, %c0_8] : memref<312x128xf32, #tpu.memory_space<vmem>>, vector<1x16xf32>
    %cst_9 = arith.constant dense<0.000000e+00> : vector<8x128xf32>
    %15 = tpu.matmul %12, %13, %cst_9 {dimension_numbers = #tpu.dot_dimension_numbers<[1], [0], [0], [1], [0, 0, 1, 1], [], []>} : vector<8x128xf32>, vector<128x128xf32>, vector<8x128xf32> -> vector<8x128xf32>
    %16 = vector.extract_strided_slice %15 {offsets = [0, 0], sizes = [8, 16], strides = [1, 1]} : vector<8x128xf32> to vector<8x16xf32>
    %17 = vector.broadcast %14 : vector<1x16xf32> to vector<8x16xf32>
    %18 = arith.addf %16, %17 : vector<8x16xf32>
    %19 = tpu.iota {dimensions = array<i32: 1>} : vector<1x16xi32>
    %c4_i32 = arith.constant 4 : i32
    %c0_i32 = arith.constant 0 : i32
    %20 = arith.cmpi eq, %c4_i32, %c0_i32 : i32
    %c1_i32 = arith.constant 1 : i32
    %21 = arith.select %20, %c1_i32, %c4_i32 : i32
    %22 = vector.broadcast %21 : i32 to vector<1x16xi32>
    %23 = arith.remsi %19, %22 : vector<1x16xi32>
    %c0_i32_10 = arith.constant 0 : i32
    %24 = vector.broadcast %c0_i32_10 : i32 to vector<1x16xi32>
    %25 = arith.cmpi ne, %23, %24 : vector<1x16xi32>
    %c0_i32_11 = arith.constant 0 : i32
    %26 = vector.broadcast %c0_i32_11 : i32 to vector<1x16xi32>
    %27 = arith.cmpi slt, %23, %26 : vector<1x16xi32>
    %c0_i32_12 = arith.constant 0 : i32
    %28 = arith.cmpi slt, %21, %c0_i32_12 : i32
    %29 = vector.broadcast %28 : i1 to vector<1x16xi1>
    %30 = vector.broadcast %29 : vector<1x16xi1> to vector<1x16xi1>
    %31 = arith.xori %27, %30 : vector<1x16xi1>
    %32 = arith.andi %31, %25 : vector<1x16xi1>
    %33 = vector.broadcast %21 : i32 to vector<1x16xi32>
    %34 = arith.addi %23, %33 : vector<1x16xi32>
    %35 = arith.select %32, %34, %23 : vector<1x16xi1>, vector<1x16xi32>
    %c2_i32 = arith.constant 2 : i32
    %36 = vector.broadcast %c2_i32 : i32 to vector<1x16xi32>
    %37 = arith.cmpi sge, %35, %36 : vector<1x16xi32>
    %38 = math.exp %18 : vector<8x16xf32>
    %39 = vector.shape_cast %37 : vector<1x16xi1> to vector<1x16xi1>
    %40 = vector.broadcast %39 : vector<1x16xi1> to vector<8x16xi1>
    %41 = arith.select %40, %38, %18 : vector<8x16xi1>, vector<8x16xf32>
    %c0_13 = arith.constant 0 : index
    %c0_14 = arith.constant 0 : index
    %42 = vector.load %arg3[%c0_13, %c0_14] : memref<8x16xf32, #tpu.memory_space<vmem>>, vector<8x16xf32>
    tpu.vector_store %arg3[%c0_13, %c0_14], %41 {strides = array<i32>} : memref<8x16xf32, #tpu.memory_space<vmem>>, vector<8x16xf32>,
    return
  }
  func.func @transform_0(%arg0: i32) -> (i32, i32) {
    %c0_i32 = arith.constant 0 : i32
    %c0_i32_0 = arith.constant 0 : i32
    return %arg0, %c0_i32 : i32, i32
  }
  func.func @transform_1(%arg0: i32) -> (i32, i32) {
    %c0_i32 = arith.constant 0 : i32
    %c0_i32_0 = arith.constant 0 : i32
    %c0_i32_1 = arith.constant 0 : i32
    return %c0_i32, %c0_i32_0 : i32, i32
  }
  func.func @transform_2(%arg0: i32) -> (i32, i32) {
    %c0_i32 = arith.constant 0 : i32
    %c0_i32_0 = arith.constant 0 : i32
    return %arg0, %c0_i32 : i32, i32
  }
}

</mosaic_0001>

<llo_original>
// kernel: tpu_custom_call.1
$region0: #{tpu_custom_call.1}
  #allocation0 [shape = 'u32[]', space=smem, size = 0x4, offset = 0x4, fixed_abs, tag = 'smem constant byte address 0x4 - core index']
  #allocation1 [shape = 'u32[144,128]{1,0:T(1,128)}', space=vmem, size = 0x12000, scoped, tag = 'internal scratch']
  %s0 = inlined_call_operand.hbm [shape: f32[16,32], index: 0, kind: input, shape index: {}]
  %s1 = inlined_call_operand.hbm [shape: f32[312,128], index: 1, kind: input, shape index: {}]
  %s2 = inlined_call_operand.hbm [shape: f32[16,16], index: 2, kind: output, shape index: {}]
  %s3 = sld [smem:[#allocation0]]
  $region49: #{tpu_custom_call.1} parent=0
    _
  %s5 = ssub.s32 1, %s3
  %s6 = scalar_select 0, %s5, %s3
  $region1: #{tpu_custom_call.1} parent=0
    #allocation2 [shape = 'u8[8192]{0}', space=vmem, size = 0x2000, scoped, tag = 'input window, operand 0']
    #allocation3 [shape = 's32[2]{0}', space=sflag, size = 0x8, scoped, tag = 'scoped memory for tpu_custom_call.1']
    #allocation4 [shape = 's32[2]{0}', space=sflag, size = 0x8, scoped, tag = 'scoped memory for tpu_custom_call.1']
    #allocation5 [shape = 'u8[159744]{0}', space=vmem, size = 0x27000, scoped, tag = 'input window, operand 1, single buffered']
    #allocation6 [shape = 's32[1]{0}', space=sflag, size = 0x4, scoped, tag = 'scoped memory for tpu_custom_call.1']
    #allocation7 [shape = 'u8[8192]{0}', space=vmem, size = 0x2000, scoped, tag = 'output window, operand 0']
    %7 = vsyncpa [#allocation3], 0
    %s8 = scalar_lea.sflag [#allocation3], 1
    %9 = vsyncpa %s8, 0
    %10 = vsyncpa [#allocation6], 0
    %11 = vsyncpa [#allocation4], 0
    %s12 = scalar_lea.sflag [#allocation4], 1
    %13 = vsyncpa %s12, 0
    loop: start=0, step=1, limit=4
    $region2: #{tpu_custom_call.1} parent=1 // loop_pre_header
      _
    $region3: #{tpu_custom_call.1} parent=1 // loop_header
      %s15 = sphi 0, %s19
      %p16 = scmp.ge.s32.totalorder %s15, 4
      %s25 = sphi 0, %s27
      %s28 = sphi 0, %s25
      %s29 = sphi 0, %s28
      %s45 = sphi 0, %s29
      %s49 = sphi 0, %s49
      %s51 = sphi 0, %s49
      %s52 = sphi 0, %s51
      %s66 = sphi 0, %s52
      %s72 = sphi 0, %s74
      %s75 = sphi 0, %s72
      %s76 = sphi 0, %s75
      %s92 = sphi 0, %s76
    $region4: #{tpu_custom_call.1} parent=1 // loop_header_branch
      %18 = sbr.rel (%p16) target = $region8
    $region5: #{tpu_custom_call.1} parent=1 // loop_body
      %s20 = ssub.s32 %s15, 1
      %s21 = ssub.s32 %s15, 2
      %s22 = sadd.s32 %s15, 1
      %s23 = ssub.s32 %s15, %s22
      %p24 = scmp.eq.s32.totalorder %s23, 0
      %s26 = sadd.s32 %s25, 1
      %s27 = scalar_select %p24, %s25, %s26
      %p30 = pneg %p24
      %p31 = scmp.eq.s32.totalorder %s15, 1
      %p32 = por %p30, %p31
      %p33 = scmp.ne.s32.totalorder %s25, %s28
      %p34 = scmp.eq.s32.totalorder %s15, 0
      %p35 = por %p33, %p34
      %p36 = scmp.ne.s32.totalorder %s25, %s28
      %p37 = scmp.eq.s32.totalorder %s20, 1
      %p38 = por %p36, %p37
      %p39 = scmp.ne.s32.totalorder %s28, %s29
      %p40 = scmp.eq.s32.totalorder %s20, 0
      %p41 = por %p39, %p40
      %p42 = scmp.ne.s32.totalorder %s28, %s29
      %p43 = scmp.eq.s32.totalorder %s21, 1
      %p44 = por %p42, %p43
      %p46 = scmp.ne.s32.totalorder %s29, %s45
      %p47 = scmp.eq.s32.totalorder %s21, 0
      %p48 = por %p46, %p47
      %s50 = sadd.s32 %s49, 1
      %p53 = scmp.eq.s32.totalorder %s15, 1
      %p54 = scmp.ne.s32.totalorder %s49, %s51
      %p55 = scmp.eq.s32.totalorder %s15, 0
      %p56 = por %p54, %p55
      %p57 = scmp.ne.s32.totalorder %s49, %s51
      %p58 = scmp.eq.s32.totalorder %s20, 1
      %p59 = por %p57, %p58
      %p60 = scmp.ne.s32.totalorder %s51, %s52
      %p61 = scmp.eq.s32.totalorder %s20, 0
      %p62 = por %p60, %p61
      %p63 = scmp.ne.s32.totalorder %s51, %s52
      %p64 = scmp.eq.s32.totalorder %s21, 1
      %p65 = por %p63, %p64
      %p67 = scmp.ne.s32.totalorder %s52, %s66
      %p68 = scmp.eq.s32.totalorder %s21, 0
      %p69 = por %p67, %p68
      %s70 = ssub.s32 %s15, %s22
      %p71 = scmp.eq.s32.totalorder %s70, 0
      %s73 = sadd.s32 %s72, 1
      %s74 = scalar_select %p71, %s72, %s73
      %p77 = pneg %p71
      %p78 = scmp.eq.s32.totalorder %s15, 1
      %p79 = por %p77, %p78
      %p80 = scmp.ne.s32.totalorder %s72, %s75
      %p81 = scmp.eq.s32.totalorder %s15, 0
      %p82 = por %p80, %p81
      %p83 = scmp.ne.s32.totalorder %s72, %s75
      %p84 = scmp.eq.s32.totalorder %s20, 1
      %p85 = por %p83, %p84
      %p86 = scmp.ne.s32.totalorder %s75, %s76
      %p87 = scmp.eq.s32.totalorder %s20, 0
      %p88 = por %p86, %p87
      %p89 = scmp.ne.s32.totalorder %s75, %s76
      %p90 = scmp.eq.s32.totalorder %s21, 1
      %p91 = por %p89, %p90
      %p93 = scmp.ne.s32.totalorder %s76, %s92
      %p94 = scmp.eq.s32.totalorder %s21, 0
      %p95 = por %p93, %p94
      %p96 = scmp.le.s32.totalorder 1, %s15
      %p97 = scmp.lt.s32.totalorder %s15, 3
      %p98 = pnand %p96, %p97
      %p99 = pneg %p98
      // Predicated region
      $region9: #{tpu_custom_call.1} parent=5 // pred_check
        _
      $region10: #{tpu_custom_call.1} parent=5 // pred_check_branch
        %101 = sbr.rel (%p98) target = $region12
      $region11: #{tpu_custom_call.1} parent=5 // pred_region
        %s102 = ssub.s32 %s15, 1
        // Predicated region
        $region13: #{tpu_custom_call.1} parent=11 // pred_check
          %p103 = pneg %p62
        $region14: #{tpu_custom_call.1} parent=11 // pred_check_branch
          %105 = sbr.rel (%p103) target = $region16
        $region15: #{tpu_custom_call.1} parent=11 // pred_region
          %s107 = ssub.s32 4992, 4992
          %108 = vsyncadd [#allocation6], %s107
          %s109 = sshll.u32 [#allocation5], 4
          %s110 = int_to_ptr.vmem [resolvable:$true] %s109
          %115 = dma.hbm_to_vmem [thread:$0]  %s1, 4992, %s110, [#allocation6], 128, 128, 8
        $region16: #{tpu_custom_call.1} parent=11 // pred_fallthru
          _
      $region12: #{tpu_custom_call.1} parent=5 // pred_fallthru
        _
      %p116 = scmp.lt.s32.totalorder %s15, 2
      // Predicated region
      $region17: #{tpu_custom_call.1} parent=5 // pred_check
        %p117 = pneg %p116
      $region18: #{tpu_custom_call.1} parent=5 // pred_check_branch
        %119 = sbr.rel (%p117) target = $region20
      $region19: #{tpu_custom_call.1} parent=5 // pred_region
        // Predicated region
        $region21: #{tpu_custom_call.1} parent=19 // pred_check
          %p120 = pneg %p35
        $region22: #{tpu_custom_call.1} parent=19 // pred_check_branch
          %122 = sbr.rel (%p120) target = $region24
        $region23: #{tpu_custom_call.1} parent=19 // pred_region
          %s123 = sand.u32 %s25, 1
          %s124 = scalar_lea.sflag [#allocation3], %s123
          %s125 = sand.u32 %s25, 1
          %s126 = smul.addr %s125, 8
          %s127 = scalar_lea.vmem [#allocation2], %s126
          %s129 = ssub.s32 128, 128
          %130 = vsyncadd %s124, %s129
          %s131 = smul.addr %s15, 128
          %s132 = scalar_lea.hbm %s0, %s131
          %s134 = sshll.u32 %s127, 4
          %s135 = int_to_ptr.vmem [resolvable:$true] %s134
          %137 = dma.hbm_to_vmem [thread:$0]  %s132, 128, %s135, %s124
        $region24: #{tpu_custom_call.1} parent=19 // pred_fallthru
          _
      $region20: #{tpu_custom_call.1} parent=5 // pred_fallthru
        _
      %p138 = scmp.le.s32.totalorder 1, %s15
      %p139 = scmp.lt.s32.totalorder %s15, 3
      %p140 = pnand %p138, %p139
      %p141 = pneg %p140
      // Predicated region
      $region25: #{tpu_custom_call.1} parent=5 // pred_check
        _
      $region26: #{tpu_custom_call.1} parent=5 // pred_check_branch
        %143 = sbr.rel (%p140) target = $region28
      $region27: #{tpu_custom_call.1} parent=5 // pred_region
        %s144 = ssub.s32 %s15, 1
        %s145 = sand.u32 %s28, 1
        %s146 = scalar_lea.sflag [#allocation3], %s145
        %s147 = sand.u32 %s28, 1
        %s148 = smul.addr %s147, 8
        %s149 = scalar_lea.vmem [#allocation2], %s148
        // Predicated region
        $region29: #{tpu_custom_call.1} parent=27 // pred_check
          %p150 = pneg %p41
        $region30: #{tpu_custom_call.1} parent=27 // pred_check_branch
          %152 = sbr.rel (%p150) target = $region32
        $region31: #{tpu_custom_call.1} parent=27 // pred_region
          %153 = dma.done %s146, 128
        $region32: #{tpu_custom_call.1} parent=27 // pred_fallthru
          _
        // Predicated region
        $region33: #{tpu_custom_call.1} parent=27 // pred_check
          %p154 = pneg %p62
        $region34: #{tpu_custom_call.1} parent=27 // pred_check_branch
          %156 = sbr.rel (%p154) target = $region36
        $region35: #{tpu_custom_call.1} parent=27 // pred_region
          %157 = dma.done [#allocation6], 4992
        $region36: #{tpu_custom_call.1} parent=27 // pred_fallthru
          _
        %s158 = sand.u32 %s28, 1
        %s159 = scalar_lea.sflag [#allocation3], %s158
        %s160 = sand.u32 %s28, 1
        %s161 = smul.addr %s160, 8
        %s162 = scalar_lea.vmem [#allocation2], %s161
        %p163 = pneg %p41
        %p164 = pneg %p38
        %p165 = pneg %p62
        %p166 = pneg %p59
        %p167 = pneg %p88
        %p168 = pneg %p85
        %s169 = sand.u32 %s75, 1
        %s170 = scalar_lea.sflag [#allocation4], %s169
        %s171 = sand.u32 %s75, 1
        %s172 = smul.addr %s171, 8
        %s173 = scalar_lea.vmem [#allocation7], %s172
        %v174 = vld [vmem:[%s149] sm:$0xff]
        %v175 = vld [vmem:[#allocation5] sm:$0xff]
        %v176 = vld [vmem:[#allocation5 + $0x8] sm:$0xff]
        %v177 = vld [vmem:[#allocation5 + $0x10] sm:$0xff]
        %v178 = vld [vmem:[#allocation5 + $0x18] sm:$0xff]
        %v179 = vld [vmem:[#allocation5 + $0x20] sm:$0x1]
        %v180 = vlaneseq
        %v181 = vshrl.u32 %v180, 7
        %v182 = vsub.s32 0, %v181
        %v183 = vrot.slane %v179, %v182
        %vm184 = vcmask 261120
        %v186 = vsel %vm184, %v174, 0
        %188 = vmatprep.subr.mxu0 0.0
        %189 = vmatpush1.msra.mxu0 0.0
        %190 = vmatprep.subr.mxu0 0.0
        %191 = vmatpush1.msra.mxu0 0.0
        %192 = vmatprep.subr.mxu0 0.0
        %193 = vmatpush1.msra.mxu0 0.0
        %194 = vmatprep.subr.mxu0 0.0
        %195 = vmatpush1.msra.mxu0 0.0
        %196 = vmatprep.subr.mxu0 0.0
        %197 = vmatpush1.msra.mxu0 0.0
        %198 = vmatprep.subr.mxu0 0.0
        %199 = vmatpush1.msra.mxu0 0.0
        %200 = vmatprep.subr.mxu0 0.0
        %201 = vmatpush1.msra.mxu0 0.0
        %202 = vmatprep.subr.mxu0 0.0
        %203 = vmatpush1.msra.mxu0 0.0
        %204 = vmatprep.subr.mxu0 0.0
        %205 = vmatpush1.msra.mxu0 0.0
        %206 = vmatprep.subr.mxu0 0.0
        %207 = vmatpush1.msra.mxu0 0.0
        %208 = vmatprep.subr.mxu0 0.0
        %209 = vmatpush1.msra.mxu0 0.0
        %210 = vmatprep.subr.mxu0 0.0
        %211 = vmatpush1.msra.mxu0 0.0
        %212 = vmatprep.subr.mxu0 0.0
        %213 = vmatpush1.msra.mxu0 %v178
        %214 = vmatprep.subr.mxu0 0.0
        %215 = vmatpush1.msra.mxu0 %v177
        %216 = vmatprep.subr.mxu0 0.0
        %217 = vmatpush1.msra.mxu0 %v176
        %218 = vmatprep.subr.mxu0 0.0
        %219 = vmatpush1.msra.mxu0 %v175
        %220 = vmatprep.subr.mxu0 0.0
        %221 = vmatpush2.msra.mxu0 0.0
        %222 = vmatprep.subr.mxu0 0.0
        %223 = vmatpush2.msra.mxu0 0.0
        %224 = vmatprep.subr.mxu0 0.0
        %225 = vmatpush2.msra.mxu0 0.0
        %226 = vmatprep.subr.mxu0 0.0
        %227 = vmatpush2.msra.mxu0 0.0
        %228 = vmatprep.subr.mxu0 0.0
        %229 = vmatpush2.msra.mxu0 0.0
        %230 = vmatprep.subr.mxu0 0.0
        %231 = vmatpush2.msra.mxu0 0.0
        %232 = vmatprep.subr.mxu0 0.0
        %233 = vmatpush2.msra.mxu0 0.0
        %234 = vmatprep.subr.mxu0 0.0
        %235 = vmatpush2.msra.mxu0 0.0
        %236 = vmatprep.subr.mxu0 0.0
        %237 = vmatpush2.msra.mxu0 0.0
        %238 = vmatprep.subr.mxu0 0.0
        %239 = vmatpush2.msra.mxu0 0.0
        %240 = vmatprep.subr.mxu0 0.0
        %241 = vmatpush2.msra.mxu0 0.0
        %242 = vmatprep.subr.mxu0 0.0
        %243 = vmatpush2.msra.mxu0 0.0
        %244 = vmatprep.subr.mxu0 0.0
        %245 = vmatpush2.msra.mxu0 0.0
        %246 = vmatprep.subr.mxu0 0.0
        %247 = vmatpush2.msra.mxu0 0.0
        %248 = vmatprep.subr.mxu0 0.0
        %249 = vmatpush2.msra.mxu0 0.0
        %250 = vmatprep.subr.mxu0 0.0
        %251 = vmatpush2.msra.mxu0 0.0
        %252 = vmatprep.mubr.f32.mxu0 0.0
        %253 = vmatmul.mubr.f32.gmra.mxu0 %v186
        %v254 = vpop.f32.mrf.mxu0
        %v255 = vadd.f32 %v183, %v254
        %v256 = vpop.f32.mrf.mxu0
        %257 = vdwg.mxu0
        %v258 = vtanh.pop %v255
        %v259 = vld [vmem:[#allocation5 + $0x28] sm:$0xff]
        %v260 = vld [vmem:[#allocation5 + $0x30] sm:$0xff]
        %v261 = vld [vmem:[#allocation5 + $0x38] sm:$0xff]
        %v262 = vld [vmem:[#allocation5 + $0x40] sm:$0xff]
        %v263 = vld [vmem:[#allocation5 + $0x48] sm:$0xff]
        %v264 = vld [vmem:[#allocation5 + $0x50] sm:$0xff]
        %v265 = vld [vmem:[#allocation5 + $0x58] sm:$0xff]
        %v266 = vld [vmem:[#allocation5 + $0x60] sm:$0xff]
        %v267 = vld [vmem:[#allocation5 + $0x68] sm:$0xff]
        %v268 = vld [vmem:[#allocation5 + $0x70] sm:$0xff]
        %v269 = vld [vmem:[#allocation5 + $0x78] sm:$0xff]
        %v270 = vld [vmem:[#allocation5 + $0x80] sm:$0xff]
        %v271 = vld [vmem:[#allocation5 + $0x88] sm:$0xff]
        %v272 = vld [vmem:[#allocation5 + $0x90] sm:$0xff]
        %v273 = vld [vmem:[#allocation5 + $0x98] sm:$0xff]
        %v274 = vld [vmem:[#allocation5 + $0xa0] sm:$0xff]
        %v275 = vld [vmem:[#allocation5 + $0xa8] sm:$0x1]
        %v276 = vlaneseq
        %v277 = vshrl.u32 %v276, 7
        %v278 = vsub.s32 0, %v277
        %v279 = vrot.slane %v275, %v278
        %280 = vmatprep.subr.mxu0 0.0
        %281 = vmatpush1.msra.mxu0 %v274
        %282 = vmatprep.subr.mxu0 0.0
        %283 = vmatpush1.msra.mxu0 %v273
        %284 = vmatprep.subr.mxu0 0.0
        %285 = vmatpush1.msra.mxu0 %v272
        %286 = vmatprep.subr.mxu0 0.0
        %287 = vmatpush1.msra.mxu0 %v271
        %288 = vmatprep.subr.mxu0 0.0
        %289 = vmatpush1.msra.mxu0 %v270
        %290 = vmatprep.subr.mxu0 0.0
        %291 = vmatpush1.msra.mxu0 %v269
        %292 = vmatprep.subr.mxu0 0.0
        %293 = vmatpush1.msra.mxu0 %v268
        %294 = vmatprep.subr.mxu0 0.0
        %295 = vmatpush1.msra.mxu0 %v267
        %296 = vmatprep.subr.mxu0 0.0
        %297 = vmatpush1.msra.mxu0 %v266
        %298 = vmatprep.subr.mxu0 0.0
        %299 = vmatpush1.msra.mxu0 %v265
        %300 = vmatprep.subr.mxu0 0.0
        %301 = vmatpush1.msra.mxu0 %v264
        %302 = vmatprep.subr.mxu0 0.0
        %303 = vmatpush1.msra.mxu0 %v263
        %304 = vmatprep.subr.mxu0 0.0
        %305 = vmatpush1.msra.mxu0 %v262
        %306 = vmatprep.subr.mxu0 0.0
        %307 = vmatpush1.msra.mxu0 %v261
        %308 = vmatprep.subr.mxu0 0.0
        %309 = vmatpush1.msra.mxu0 %v260
        %310 = vmatprep.subr.mxu0 0.0
        %311 = vmatpush1.msra.mxu0 %v259
        %312 = vmatprep.subr.mxu0 0.0
        %313 = vmatpush2.msra.mxu0 0.0
        %314 = vmatprep.subr.mxu0 0.0
        %315 = vmatpush2.msra.mxu0 0.0
        %316 = vmatprep.subr.mxu0 0.0
        %317 = vmatpush2.msra.mxu0 0.0
        %318 = vmatprep.subr.mxu0 0.0
        %319 = vmatpush2.msra.mxu0 0.0
        %320 = vmatprep.subr.mxu0 0.0
        %321 = vmatpush2.msra.mxu0 0.0
        %322 = vmatprep.subr.mxu0 0.0
        %323 = vmatpush2.msra.mxu0 0.0
        %324 = vmatprep.subr.mxu0 0.0
        %325 = vmatpush2.msra.mxu0 0.0
        %326 = vmatprep.subr.mxu0 0.0
        %327 = vmatpush2.msra.mxu0 0.0
        %328 = vmatprep.subr.mxu0 0.0
        %329 = vmatpush2.msra.mxu0 0.0
        %330 = vmatprep.subr.mxu0 0.0
        %331 = vmatpush2.msra.mxu0 0.0
        %332 = vmatprep.subr.mxu0 0.0
        %333 = vmatpush2.msra.mxu0 0.0
        %334 = vmatprep.subr.mxu0 0.0
        %335 = vmatpush2.msra.mxu0 0.0
        %336 = vmatprep.subr.mxu0 0.0
        %337 = vmatpush2.msra.mxu0 0.0
        %338 = vmatprep.subr.mxu0 0.0
        %339 = vmatpush2.msra.mxu0 0.0
        %340 = vmatprep.subr.mxu0 0.0
        %341 = vmatpush2.msra.mxu0 0.0
        %342 = vmatprep.subr.mxu0 0.0
        %343 = vmatpush2.msra.mxu0 0.0
        %344 = vmatprep.mubr.f32.mxu0 0.0
        %345 = vmatmul.mubr.f32.gmra.mxu0 %v258
        %v346 = vpop.f32.mrf.mxu0
        %v347 = vadd.f32 %v279, %v346
        %v348 = vpop.f32.mrf.mxu0
        %349 = vdwg.mxu0
        %v350 = vtanh.pop %v347
        %v351 = vld [vmem:[#allocation5 + $0xb0] sm:$0xff]
        %v352 = vld [vmem:[#allocation5 + $0xb8] sm:$0xff]
        %v353 = vld [vmem:[#allocation5 + $0xc0] sm:$0xff]
        %v354 = vld [vmem:[#allocation5 + $0xc8] sm:$0xff]
        %v355 = vld [vmem:[#allocation5 + $0xd0] sm:$0xff]
        %v356 = vld [vmem:[#allocation5 + $0xd8] sm:$0xff]
        %v357 = vld [vmem:[#allocation5 + $0xe0] sm:$0xff]
        %v358 = vld [vmem:[#allocation5 + $0xe8] sm:$0xff]
        %v359 = vld [vmem:[#allocation5 + $0xf0] sm:$0xff]
        %v360 = vld [vmem:[#allocation5 + $0xf8] sm:$0xff]
        %v361 = vld [vmem:[#allocation5 + $0x100] sm:$0xff]
        %v362 = vld [vmem:[#allocation5 + $0x108] sm:$0xff]
        %v363 = vld [vmem:[#allocation5 + $0x110] sm:$0xff]
        %v364 = vld [vmem:[#allocation5 + $0x118] sm:$0xff]
        %v365 = vld [vmem:[#allocation5 + $0x120] sm:$0xff]
        %v366 = vld [vmem:[#allocation5 + $0x128] sm:$0xff]
        %v367 = vld [vmem:[#allocation5 + $0x130] sm:$0x1]
        %368 = vmatprep.subr.mxu0 0.0
        %369 = vmatpush1.msra.mxu0 %v366
        %370 = vmatprep.subr.mxu0 0.0
        %371 = vmatpush1.msra.mxu0 %v365
        %372 = vmatprep.subr.mxu0 0.0
        %373 = vmatpush1.msra.mxu0 %v364
        %374 = vmatprep.subr.mxu0 0.0
        %375 = vmatpush1.msra.mxu0 %v363
        %376 = vmatprep.subr.mxu0 0.0
        %377 = vmatpush1.msra.mxu0 %v362
        %378 = vmatprep.subr.mxu0 0.0
        %379 = vmatpush1.msra.mxu0 %v361
        %380 = vmatprep.subr.mxu0 0.0
        %381 = vmatpush1.msra.mxu0 %v360
        %382 = vmatprep.subr.mxu0 0.0
        %383 = vmatpush1.msra.mxu0 %v359
        %384 = vmatprep.subr.mxu0 0.0
        %385 = vmatpush1.msra.mxu0 %v358
        %386 = vmatprep.subr.mxu0 0.0
        %387 = vmatpush1.msra.mxu0 %v357
        %388 = vmatprep.subr.mxu0 0.0
        %389 = vmatpush1.msra.mxu0 %v356
        %390 = vmatprep.subr.mxu0 0.0
        %391 = vmatpush1.msra.mxu0 %v355
        %392 = vmatprep.subr.mxu0 0.0
        %393 = vmatpush1.msra.mxu0 %v354
        %394 = vmatprep.subr.mxu0 0.0
        %395 = vmatpush1.msra.mxu0 %v353
        %396 = vmatprep.subr.mxu0 0.0
        %397 = vmatpush1.msra.mxu0 %v352
        %398 = vmatprep.subr.mxu0 0.0
        %399 = vmatpush1.msra.mxu0 %v351
        %400 = vmatprep.subr.mxu0 0.0
        %401 = vmatpush2.msra.mxu0 0.0
        %402 = vmatprep.subr.mxu0 0.0
        %403 = vmatpush2.msra.mxu0 0.0
        %404 = vmatprep.subr.mxu0 0.0
        %405 = vmatpush2.msra.mxu0 0.0
        %406 = vmatprep.subr.mxu0 0.0
        %407 = vmatpush2.msra.mxu0 0.0
        %408 = vmatprep.subr.mxu0 0.0
        %409 = vmatpush2.msra.mxu0 0.0
        %410 = vmatprep.subr.mxu0 0.0
        %411 = vmatpush2.msra.mxu0 0.0
        %412 = vmatprep.subr.mxu0 0.0
        %413 = vmatpush2.msra.mxu0 0.0
        %414 = vmatprep.subr.mxu0 0.0
        %415 = vmatpush2.msra.mxu0 0.0
        %416 = vmatprep.subr.mxu0 0.0
        %417 = vmatpush2.msra.mxu0 0.0
        %418 = vmatprep.subr.mxu0 0.0
        %419 = vmatpush2.msra.mxu0 0.0
        %420 = vmatprep.subr.mxu0 0.0
        %421 = vmatpush2.msra.mxu0 0.0
        %422 = vmatprep.subr.mxu0 0.0
        %423 = vmatpush2.msra.mxu0 0.0
        %424 = vmatprep.subr.mxu0 0.0
        %425 = vmatpush2.msra.mxu0 0.0
        %426 = vmatprep.subr.mxu0 0.0
        %427 = vmatpush2.msra.mxu0 0.0
        %428 = vmatprep.subr.mxu0 0.0
        %429 = vmatpush2.msra.mxu0 0.0
        %430 = vmatprep.subr.mxu0 0.0
        %431 = vmatpush2.msra.mxu0 0.0
        %432 = vmatprep.mubr.f32.mxu0 0.0
        %433 = vmatmul.mubr.f32.gmra.mxu0 %v350
        %v434 = vpop.f32.mrf.mxu0
        %v435 = vadd.f32 0.0, %v434
        %v436 = vpop.f32.mrf.mxu0
        %437 = vdwg.mxu0
        %v438 = vlaneseq
        %v439 = vshrl.u32 %v438, 7
        %v440 = vsub.s32 0, %v439
        %v441 = vrot.slane %v367, %v440
        %v442 = vadd.f32 %v435, %v441
        %v443 = vlaneseq
        %v444 = vand.u32 %v443, 127
        %vm445 = vcmp.lt.s32.totalorder %v444, 0
        %v446 = vsub.s32 0, %v444
        %v447 = vsel %vm445, %v446, %v444
        %v448 = vshrl.u32 %v447, 2
        %v449 = vand.u32 %v447, 3
        %v450 = vsub.s32 0, %v449
        %v451 = vsel %vm445, %v450, %v449
        %vm452 = vcmp.ne.s32.totalorder %v451, 0
        %vm453 = vcmp.lt.s32.totalorder %v451, 0
        %vm454 = vmand %vm453, %vm452
        %v455 = vadd.s32 %v451, 4
        %v456 = vsel %vm454, %v455, %v451
        %vm457 = vcmp.ge.s32.totalorder %v456, 2
        %v458 = vmul.f32 %v442, 1.442695
        %v459 = vpow.pop %v458
        %v460 = vsel %vm457, 1, 0
        %vm461 = vcmp.eq.s32.totalorder %v460, 1
        %v462 = vsel %vm461, %v459, %v442
        %vm463 = vcmask 130048
        %464 = vst.msk [vmem:[%s173] sm:$0xff] %vm463, %v462
        %s465 = sand.u32 %s75, 1
        %s466 = scalar_lea.sflag [#allocation4], %s465
        %s467 = sand.u32 %s75, 1
        %s468 = smul.addr %s467, 8
        %s469 = scalar_lea.vmem [#allocation7], %s468
        // Predicated region
        $region37: #{tpu_custom_call.1} parent=27 // pred_check
          %p470 = pneg %p85
        $region38: #{tpu_custom_call.1} parent=27 // pred_check_branch
          %472 = sbr.rel (%p470) target = $region40
        $region39: #{tpu_custom_call.1} parent=27 // pred_region
          %s474 = ssub.s32 128, 128
          %475 = vsyncadd %s466, %s474
          %s476 = smul.addr %s20, 128
          %s477 = scalar_lea.hbm %s2, %s476
          %s479 = sshll.u32 %s469, 4
          %s480 = int_to_ptr.vmem [resolvable:$true] %s479
          %482 = dma.vmem_to_hbm [thread:$0]  %s480, 128, %s477, %s466
        $region40: #{tpu_custom_call.1} parent=27 // pred_fallthru
          _
      $region28: #{tpu_custom_call.1} parent=5 // pred_fallthru
        _
      %p483 = scmp.le.s32.totalorder 2, %s15
      // Predicated region
      $region41: #{tpu_custom_call.1} parent=5 // pred_check
        %p484 = pneg %p483
      $region42: #{tpu_custom_call.1} parent=5 // pred_check_branch
        %486 = sbr.rel (%p484) target = $region44
      $region43: #{tpu_custom_call.1} parent=5 // pred_region
        %s487 = ssub.s32 %s15, 2
        // Predicated region
        $region45: #{tpu_custom_call.1} parent=43 // pred_check
          %p488 = pneg %p91
        $region46: #{tpu_custom_call.1} parent=43 // pred_check_branch
          %490 = sbr.rel (%p488) target = $region48
        $region47: #{tpu_custom_call.1} parent=43 // pred_region
          %s491 = sand.u32 %s76, 1
          %s492 = scalar_lea.sflag [#allocation4], %s491
          %s493 = sand.u32 %s76, 1
          %s494 = smul.addr %s493, 8
          %s495 = scalar_lea.vmem [#allocation7], %s494
          %496 = dma.done %s492, 128
        $region48: #{tpu_custom_call.1} parent=43 // pred_fallthru
          _
      $region44: #{tpu_custom_call.1} parent=5 // pred_fallthru
        _
    $region6: #{tpu_custom_call.1} parent=1 // loop_footer
      %s19 = sadd.s32 1, %s15
    $region7: #{tpu_custom_call.1} parent=1 // loop_footer_branch
      %14 = sbr.rel target = $region3
    $region8: #{tpu_custom_call.1} parent=1 // loop_exit
      _
    %497 = vsyncpa [#allocation3], 1
    %s498 = scalar_lea.sflag [#allocation3], 1
    %499 = vsyncpa %s498, 1
    %500 = vsyncpa [#allocation6], 1
    %501 = vsyncpa [#allocation4], 1
    %s502 = scalar_lea.sflag [#allocation4], 1
    %503 = vsyncpa %s502, 1

</llo_original>
